<compile_context>
chip_gen: v5e
topology: v5e:2x2
jax: 0.10.0
libtpu: 0.0.40
codegen_flags: <defaults>
</compile_context>

<pallas_src>
import functools

import jax
import jax.numpy as jnp
from jax.experimental import pallas as pl
from jax.experimental.pallas import tpu as pltpu

_LANES = 128


def _sublane_pack(dtype):
    # Sublane packing factor: f32 -> 8, bf16 -> 16, int8/fp8 -> 32.
    return {4: 8, 2: 16, 1: 32}.get(jnp.dtype(dtype).itemsize, 8)


def _vmem_budget_bytes():
    # Per-generation budget: <= 3/4 of physical VMEM with >= 16 MiB headroom
    # for compiler scratch (-> ~48 MiB on v7x, ~96 MiB on v5e/v6e).
    cap = 64 << 20
    try:
        info = pltpu.get_tpu_info()
        cap = int(getattr(info, "vmem_capacity_bytes", cap))
    except Exception:
        pass  # no TPU visible at trace time (e.g. interpret mode) -> v7x-safe default
    return int(min(cap - (16 << 20), (cap * 3) // 4))


def _pick_tile_rows(phys_rows, width, itemsize, pack, vmem_budget):
    # VMEM bytes per block row: double-buffered in + out blocks plus ~2 live
    # f32 (tile, width) temporaries inside the kernel.
    per_row = width * (4 * itemsize + 2 * 4)
    cap_rows_vmem = max(pack, vmem_budget // per_row)
    target_block_bytes = 4 << 20          # amortizes the ~0.35 us per-step cost
    t = max(1, target_block_bytes // (width * itemsize))
    t = min(t, cap_rows_vmem)
    # >= 2 grid steps when rows allow, so ("parallel",) can shard across both
    # v7x TensorCores instead of leaving one idle.
    half = (phys_rows + 1) // 2
    if half >= pack:
        t = min(t, half)
    t = max(pack, (t // pack) * pack)     # sublane-packed block rows
    if t > phys_rows:                     # full-dim block is always legal
        t = phys_rows
    return t


def _layernorm_kernel(x_ref, a_ref, b_ref, o_ref, *, eps, features):
    # x_ref: (T, F); a_ref/b_ref: (1, F); o_ref: (T, F)
    x = x_ref[...].astype(jnp.float32)
    mean = jnp.mean(x, axis=-1, keepdims=True)
    diff = x - mean
    # Unbiased estimator (divide by N-1), matching torch.std default.
    var = jnp.sum(diff * diff, axis=-1, keepdims=True) * (1.0 / (features - 1))
    # Exact reciprocal on a (T, 1) vector: negligible cost, exact parity.
    inv = 1.0 / (jnp.sqrt(var) + jnp.float32(eps))
    a = a_ref[...].astype(jnp.float32)
    b = b_ref[...].astype(jnp.float32)
    o_ref[...] = (diff * inv * a + b).astype(o_ref.dtype)


def _layernorm_packed_kernel(x_ref, a_ref, b_ref, seg_ref, segt_ref, o_ref, *,
                             eps, features):
    # Lane-dense path for F < 128: each physical row holds G = 128 // F
    # logical rows.  seg (G*F, G) / segt (G, G*F) are 0/1 indicator matrices;
    # tiny MXU matmuls do the segmented reduction and the broadcast-back so
    # all wide loads/stores stay full-lane-width.
    hi = jax.lax.Precision.HIGHEST
    x = x_ref[...].astype(jnp.float32)                        # (T, G*F)
    seg = seg_ref[...]                                        # (G*F, G)
    segt = segt_ref[...]                                      # (G, G*F)
    sums = jnp.dot(x, seg, precision=hi, preferred_element_type=jnp.float32)
    mean = jnp.dot(sums * (1.0 / features), segt, precision=hi,
                   preferred_element_type=jnp.float32)        # (T, G*F)
    diff = x - mean
    ssq = jnp.dot(diff * diff, seg, precision=hi,
                  preferred_element_type=jnp.float32)         # (T, G)
    inv_seg = 1.0 / (jnp.sqrt(ssq * (1.0 / (features - 1))) + jnp.float32(eps))
    inv = jnp.dot(inv_seg, segt, precision=hi,
                  preferred_element_type=jnp.float32)         # (T, G*F)
    a = a_ref[...].astype(jnp.float32)
    b = b_ref[...].astype(jnp.float32)
    o_ref[...] = (diff * inv * a + b).astype(o_ref.dtype)


def layer_norm(x, a_2, b_2, eps=1e-6, tile_rows=None):
    """x: (..., F). a_2, b_2: (F,). Returns same shape/dtype as x."""
    orig_shape = x.shape
    features = int(orig_shape[-1])
    # Unbiased std divides by (F - 1); F == 1 would be NaN (as in torch).
    assert features >= 2, "LayerNorm with unbiased std requires features >= 2"

    rows = 1
    for d in orig_shape[:-1]:
        rows *= int(d)

    itemsize = jnp.dtype(x.dtype).itemsize
    pack = _sublane_pack(x.dtype)
    vmem_budget = _vmem_budget_bytes()

    # Lane-dense repack for small F: fold G = 128 // F logical rows into one
    # 128-lane physical row (avoids wasting 128/F of load/store bandwidth).
    groups = 1
    if features < _LANES and _LANES % features == 0:
        g = _LANES // features
        if rows % g == 0 and rows >= g:
            groups = g
    # TODO(synk): lane-dense repack for F that neither reaches nor divides 128
    # (those shapes currently fall back to partially-masked stores).

    phys_rows = rows // groups
    width = groups * features
    x2 = x.reshape(phys_rows, width)

    a_row = a_2.reshape(1, features)
    b_row = b_2.reshape(1, features)
    if groups > 1:
        a_row = jnp.tile(a_row, (1, groups))
        b_row = jnp.tile(b_row, (1, groups))

    if tile_rows is None:
        tile_rows = _pick_tile_rows(phys_rows, width, itemsize, pack, vmem_budget)
    tile_rows = int(min(tile_rows, phys_rows))
    num_tiles = pl.cdiv(phys_rows, tile_rows)   # ragged tail: OOB writes discarded

    per_row_vmem = width * (4 * itemsize + 2 * 4)
    needed = tile_rows * per_row_vmem + 8 * width * 4 + (4 << 20)
    vmem_limit = int(min(vmem_budget, max(needed, 32 << 20)))

    row_spec = pl.BlockSpec((tile_rows, width), lambda i: (i, 0))
    param_spec = pl.BlockSpec((1, width), lambda i: (0, 0))

    cost = pl.CostEstimate(
        flops=8 * rows * features,
        transcendentals=rows,
        bytes_accessed=2 * rows * features * itemsize
        + 2 * features * jnp.dtype(a_2.dtype).itemsize,
    )

    if groups == 1:
        kernel = functools.partial(_layernorm_kernel, eps=eps, features=features)
        in_specs = [row_spec, param_spec, param_spec]
        args = (x2, a_row, b_row)
    else:
        seg = jnp.repeat(jnp.eye(groups, dtype=jnp.float32), features, axis=0)
        segt = seg.T
        kernel = functools.partial(_layernorm_packed_kernel, eps=eps,
                                   features=features)
        in_specs = [
            row_spec, param_spec, param_spec,
            pl.BlockSpec((width, groups), lambda i: (0, 0)),
            pl.BlockSpec((groups, width), lambda i: (0, 0)),
        ]
        args = (x2, a_row, b_row, seg, segt)

    out = pl.pallas_call(
        kernel,
        out_shape=jax.ShapeDtypeStruct((phys_rows, width), x.dtype),
        grid_spec=pltpu.PrefetchScalarGridSpec(
            num_scalar_prefetch=0,
            grid=(num_tiles,),
            in_specs=in_specs,
            out_specs=row_spec,
        ),
        compiler_params=pltpu.CompilerParams(
            dimension_semantics=("parallel",),  # shards rows across v7x's 2 TCs
            vmem_limit_bytes=vmem_limit,
        ),
        cost_estimate=cost,
    )(*args)

    return out.reshape(orig_shape)


if __name__ == "__main__":
    key = jax.random.PRNGKey(0)

    # Shapes implied by the module: (batch, seq, features).
    batch, seq, features = 2, 8, 32
    a_2 = jnp.ones((features,), dtype=jnp.float32)    # nn.Parameter(torch.ones)
    b_2 = jnp.zeros((features,), dtype=jnp.float32)   # nn.Parameter(torch.zeros)
    x = jax.random.normal(key, (batch, seq, features), dtype=jnp.float32)

    out = jax.block_until_ready(layer_norm(x, a_2, b_2, eps=1e-6))

    # Reference: unbiased std, eps added to std (matches the PyTorch module).
    mean = jnp.mean(x, axis=-1, keepdims=True)
    std = jnp.std(x, axis=-1, keepdims=True, ddof=1)
    ref = a_2 * (x - mean) / (std + 1e-6) + b_2
    assert out.shape == x.shape and out.dtype == x.dtype
    assert jnp.allclose(out, ref, atol=1e-4, rtol=1e-4), \
        "mismatch vs reference (lane-packed path)"

    # Second sanity check: general (F >= 128) path with a ragged row count,
    # exercising the no-padding / non-divisible-grid tail handling.
    f2 = 128
    x_b = jax.random.normal(jax.random.PRNGKey(1), (3, 7, f2), dtype=jnp.float32)
    a_b = jnp.ones((f2,), dtype=jnp.float32)
    b_b = jnp.zeros((f2,), dtype=jnp.float32)
    out_b = jax.block_until_ready(layer_norm(x_b, a_b, b_b, eps=1e-6))
    m_b = jnp.mean(x_b, axis=-1, keepdims=True)
    s_b = jnp.std(x_b, axis=-1, keepdims=True, ddof=1)
    ref_b = a_b * (x_b - m_b) / (s_b + 1e-6) + b_b
    assert jnp.allclose(out_b, ref_b, atol=1e-4, rtol=1e-4), \
        "mismatch vs reference (general path / ragged tail)"

    print("KERNEL_OK")
</pallas_src>

<mosaic_0001>
module attributes {stable_mosaic.version = 11 : i64} {
  func.func @_layernorm_packed_kernel(%arg0: i32, %arg1: memref<4x128xf32, #tpu.memory_space<vmem>>, %arg2: memref<1x128xf32, #tpu.memory_space<vmem>>, %arg3: memref<1x128xf32, #tpu.memory_space<vmem>>, %arg4: memref<128x4xf32, #tpu.memory_space<vmem>>, %arg5: memref<4x128xf32, #tpu.memory_space<vmem>>, %arg6: memref<4x128xf32, #tpu.memory_space<vmem>>) attributes {dimension_semantics = [#tpu.dimension_semantics<parallel>], iteration_bounds = array<i64: 1>, scalar_prefetch = 0 : i64, scratch_operands = 0 : i64, tpu.core_type = #tpu.core_type<tc>, window_params = [{transform_indices = @transform_0, window_bounds = array<i64: 4, 128>}, {pipeline_mode = #tpu.pipeline_mode<synchronous>, transform_indices = @transform_1, window_bounds = array<i64: 1, 128>}, {pipeline_mode = #tpu.pipeline_mode<synchronous>, transform_indices = @transform_2, window_bounds = array<i64: 1, 128>}, {pipeline_mode = #tpu.pipeline_mode<synchronous>, transform_indices = @transform_3, window_bounds = array<i64: 128, 4>}, {pipeline_mode = #tpu.pipeline_mode<synchronous>, transform_indices = @transform_4, window_bounds = array<i64: 4, 128>}, {transform_indices = @transform_5, window_bounds = array<i64: 4, 128>}]} {
    %c0 = arith.constant 0 : index
    %c0_0 = arith.constant 0 : index
    %0 = vector.load %arg1[%c0, %c0_0] : memref<4x128xf32, #tpu.memory_space<vmem>>, vector<4x128xf32>
    %c0_1 = arith.constant 0 : index
    %c0_2 = arith.constant 0 : index
    %1 = vector.load %arg4[%c0_1, %c0_2] : memref<128x4xf32, #tpu.memory_space<vmem>>, vector<128x4xf32>
    %c0_3 = arith.constant 0 : index
    %c0_4 = arith.constant 0 : index
    %2 = vector.load %arg5[%c0_3, %c0_4] : memref<4x128xf32, #tpu.memory_space<vmem>>, vector<4x128xf32>
    %cst = arith.constant dense<0.000000e+00> : vector<4x4xf32>
    %3 = tpu.matmul %0, %1, %cst {dimension_numbers = #tpu.dot_dimension_numbers<[1], [0], [0], [1], [0, 0, 1, 1], [], []>, precision = #tpu.contract_precision<fp32>} : vector<4x128xf32>, vector<128x4xf32>, vector<4x4xf32> -> vector<4x4xf32>
    %cst_5 = arith.constant 3.125000e-02 : f32
    %4 = vector.broadcast %cst_5 : f32 to vector<4x4xf32>
    %5 = arith.mulf %3, %4 : vector<4x4xf32>
    %cst_6 = arith.constant dense<0.000000e+00> : vector<4x128xf32>
    %6 = tpu.matmul %5, %2, %cst_6 {dimension_numbers = #tpu.dot_dimension_numbers<[1], [0], [0], [1], [0, 0, 1, 1], [], []>, precision = #tpu.contract_precision<fp32>} : vector<4x4xf32>, vector<4x128xf32>, vector<4x128xf32> -> vector<4x128xf32>
    %7 = arith.subf %0, %6 : vector<4x128xf32>
    %8 = arith.mulf %7, %7 : vector<4x128xf32>
    %cst_7 = arith.constant dense<0.000000e+00> : vector<4x4xf32>
    %9 = tpu.matmul %8, %1, %cst_7 {dimension_numbers = #tpu.dot_dimension_numbers<[1], [0], [0], [1], [0, 0, 1, 1], [], []>, precision = #tpu.contract_precision<fp32>} : vector<4x128xf32>, vector<128x4xf32>, vector<4x4xf32> -> vector<4x4xf32>
    %cst_8 = arith.constant 0.0322580636 : f32
    %10 = vector.broadcast %cst_8 : f32 to vector<4x4xf32>
    %11 = arith.mulf %9, %10 : vector<4x4xf32>
    %12 = math.sqrt %11 : vector<4x4xf32>
    %cst_9 = arith.constant 9.99999997E-7 : f32
    %13 = vector.broadcast %cst_9 : f32 to vector<4x4xf32>
    %14 = arith.addf %12, %13 : vector<4x4xf32>
    %cst_10 = arith.constant 1.000000e+00 : f32
    %15 = vector.broadcast %cst_10 : f32 to vector<4x4xf32>
    %16 = arith.divf %15, %14 : vector<4x4xf32>
    %cst_11 = arith.constant dense<0.000000e+00> : vector<4x128xf32>
    %17 = tpu.matmul %16, %2, %cst_11 {dimension_numbers = #tpu.dot_dimension_numbers<[1], [0], [0], [1], [0, 0, 1, 1], [], []>, precision = #tpu.contract_precision<fp32>} : vector<4x4xf32>, vector<4x128xf32>, vector<4x128xf32> -> vector<4x128xf32>
    %c0_12 = arith.constant 0 : index
    %c0_13 = arith.constant 0 : index
    %18 = vector.load %arg2[%c0_12, %c0_13] : memref<1x128xf32, #tpu.memory_space<vmem>>, vector<1x128xf32>
    %c0_14 = arith.constant 0 : index
    %c0_15 = arith.constant 0 : index
    %19 = vector.load %arg3[%c0_14, %c0_15] : memref<1x128xf32, #tpu.memory_space<vmem>>, vector<1x128xf32>
    %20 = arith.mulf %7, %17 : vector<4x128xf32>
    %21 = vector.broadcast %18 : vector<1x128xf32> to vector<4x128xf32>
    %22 = arith.mulf %20, %21 : vector<4x128xf32>
    %23 = vector.broadcast %19 : vector<1x128xf32> to vector<4x128xf32>
    %24 = arith.addf %22, %23 : vector<4x128xf32>
    %c0_16 = arith.constant 0 : index
    %c0_17 = arith.constant 0 : index
    %25 = vector.load %arg6[%c0_16, %c0_17] : memref<4x128xf32, #tpu.memory_space<vmem>>, vector<4x128xf32>
    tpu.vector_store %arg6[%c0_16, %c0_17], %24 {strides = array<i32>} : memref<4x128xf32, #tpu.memory_space<vmem>>, vector<4x128xf32>,
    return
  }
  func.func @transform_0(%arg0: i32) -> (i32, i32) {
    %c0_i32 = arith.constant 0 : i32
    %c0_i32_0 = arith.constant 0 : i32
    return %arg0, %c0_i32 : i32, i32
  }
  func.func @transform_1(%arg0: i32) -> (i32, i32) {
    %c0_i32 = arith.constant 0 : i32
    %c0_i32_0 = arith.constant 0 : i32
    %c0_i32_1 = arith.constant 0 : i32
    return %c0_i32, %c0_i32_0 : i32, i32
  }
  func.func @transform_2(%arg0: i32) -> (i32, i32) {
    %c0_i32 = arith.constant 0 : i32
    %c0_i32_0 = arith.constant 0 : i32
    %c0_i32_1 = arith.constant 0 : i32
    return %c0_i32, %c0_i32_0 : i32, i32
  }
  func.func @transform_3(%arg0: i32) -> (i32, i32) {
    %c0_i32 = arith.constant 0 : i32
    %c0_i32_0 = arith.constant 0 : i32
    %c0_i32_1 = arith.constant 0 : i32
    return %c0_i32, %c0_i32_0 : i32, i32
  }
  func.func @transform_4(%arg0: i32) -> (i32, i32) {
    %c0_i32 = arith.constant 0 : i32
    %c0_i32_0 = arith.constant 0 : i32
    %c0_i32_1 = arith.constant 0 : i32
    return %c0_i32, %c0_i32_0 : i32, i32
  }
  func.func @transform_5(%arg0: i32) -> (i32, i32) {
    %c0_i32 = arith.constant 0 : i32
    %c0_i32_0 = arith.constant 0 : i32
    return %arg0, %c0_i32 : i32, i32
  }
}

</mosaic_0001>

<llo_original>
// kernel: tpu_custom_call.1
$region0: #{tpu_custom_call.1}
  #allocation0 [shape = 'u32[]', space=smem, size = 0x4, offset = 0x4, fixed_abs, tag = 'smem constant byte address 0x4 - core index']
  #allocation1 [shape = 'u32[72,128]{1,0:T(1,128)}', space=vmem, size = 0x9000, scoped, tag = 'internal scratch']
  %s0 = inlined_call_operand.vmem [shape: f32[4,128], index: 0, kind: input, shape index: {}]
  %s1 = inlined_call_operand.vmem [shape: f32[1,128], index: 1, kind: input, shape index: {}]
  %s2 = inlined_call_operand.vmem [shape: f32[1,128], index: 2, kind: input, shape index: {}]
  %s3 = inlined_call_operand.vmem [shape: f32[128,4], index: 3, kind: input, shape index: {}]
  %s4 = inlined_call_operand.vmem [shape: f32[4,128], index: 4, kind: input, shape index: {}]
  %s5 = inlined_call_operand.hbm [shape: f32[4,128], index: 5, kind: output, shape index: {}]
  %s6 = sld [smem:[#allocation0]]
  $region30: #{tpu_custom_call.1} parent=0
    _
  %s8 = ssub.s32 1, %s6
  %s9 = scalar_select 0, %s8, %s6
  $region1: #{tpu_custom_call.1} parent=0
    #allocation2 [shape = 'u8[2048]{0}', space=vmem, size = 0x800, scoped, tag = 'output window, operand 0, single buffered']
    #allocation3 [shape = 's32[1]{0}', space=sflag, size = 0x4, scoped, tag = 'scoped memory for tpu_custom_call.1']
    %10 = vsyncpa [#allocation3], 0
    // Predicated region
    $region2: #{tpu_custom_call.1} parent=1 // pred_check
      _
    $region3: #{tpu_custom_call.1} parent=1 // pred_check_branch
      %12 = sbr.rel (0) target = $region5
    $region4: #{tpu_custom_call.1} parent=1 // pred_region
      _
    $region5: #{tpu_custom_call.1} parent=1 // pred_fallthru
      _
    // Predicated region
    $region6: #{tpu_custom_call.1} parent=1 // pred_check
      _
    $region7: #{tpu_custom_call.1} parent=1 // pred_check_branch
      %14 = sbr.rel (0) target = $region9
    $region8: #{tpu_custom_call.1} parent=1 // pred_region
      _
    $region9: #{tpu_custom_call.1} parent=1 // pred_fallthru
      _
    // Predicated region
    $region10: #{tpu_custom_call.1} parent=1 // pred_check
      _
    $region11: #{tpu_custom_call.1} parent=1 // pred_check_branch
      %16 = sbr.rel (0) target = $region13
    $region12: #{tpu_custom_call.1} parent=1 // pred_region
      _
    $region13: #{tpu_custom_call.1} parent=1 // pred_fallthru
      _
    // Predicated region
    $region14: #{tpu_custom_call.1} parent=1 // pred_check
      _
    $region15: #{tpu_custom_call.1} parent=1 // pred_check_branch
      %18 = sbr.rel (0) target = $region17
    $region16: #{tpu_custom_call.1} parent=1 // pred_region
      _
    $region17: #{tpu_custom_call.1} parent=1 // pred_fallthru
      _
    // Predicated region
    $region18: #{tpu_custom_call.1} parent=1 // pred_check
      _
    $region19: #{tpu_custom_call.1} parent=1 // pred_check_branch
      %20 = sbr.rel (0) target = $region21
    $region20: #{tpu_custom_call.1} parent=1 // pred_region
      _
    $region21: #{tpu_custom_call.1} parent=1 // pred_fallthru
      _
    %v21 = vld [vmem:[%s0] sm:$0xf]
    %v22 = vld [vmem:[%s3] sm:$0xff]
    %v23 = vld [vmem:[%s3 + $0x8] sm:$0xff]
    %v24 = vld [vmem:[%s3 + $0x10] sm:$0xff]
    %v25 = vld [vmem:[%s3 + $0x18] sm:$0xff]
    %v26 = vld [vmem:[%s3 + $0x20] sm:$0xff]
    %v27 = vld [vmem:[%s3 + $0x28] sm:$0xff]
    %v28 = vld [vmem:[%s3 + $0x30] sm:$0xff]
    %v29 = vld [vmem:[%s3 + $0x38] sm:$0xff]
    %v30 = vld [vmem:[%s3 + $0x40] sm:$0xff]
    %v31 = vld [vmem:[%s3 + $0x48] sm:$0xff]
    %v32 = vld [vmem:[%s3 + $0x50] sm:$0xff]
    %v33 = vld [vmem:[%s3 + $0x58] sm:$0xff]
    %v34 = vld [vmem:[%s3 + $0x60] sm:$0xff]
    %v35 = vld [vmem:[%s3 + $0x68] sm:$0xff]
    %v36 = vld [vmem:[%s3 + $0x70] sm:$0xff]
    %v37 = vld [vmem:[%s3 + $0x78] sm:$0xff]
    %v38 = vld [vmem:[%s4] sm:$0xf]
    %v39 = vand.u32 %v37, 4294901760
    %40 = vmatpush.msra.mxu0 %v39
    %v41 = vand.u32 %v36, 4294901760
    %42 = vmatpush.msra.mxu0 %v41
    %v43 = vand.u32 %v35, 4294901760
    %44 = vmatpush.msra.mxu0 %v43
    %v45 = vand.u32 %v34, 4294901760
    %46 = vmatpush.msra.mxu0 %v45
    %v47 = vand.u32 %v33, 4294901760
    %48 = vmatpush.msra.mxu0 %v47
    %v49 = vand.u32 %v32, 4294901760
    %50 = vmatpush.msra.mxu0 %v49
    %v51 = vand.u32 %v31, 4294901760
    %52 = vmatpush.msra.mxu0 %v51
    %v53 = vand.u32 %v30, 4294901760
    %54 = vmatpush.msra.mxu0 %v53
    %v55 = vand.u32 %v29, 4294901760
    %56 = vmatpush.msra.mxu0 %v55
    %v57 = vand.u32 %v28, 4294901760
    %58 = vmatpush.msra.mxu0 %v57
    %v59 = vand.u32 %v27, 4294901760
    %60 = vmatpush.msra.mxu0 %v59
    %v61 = vand.u32 %v26, 4294901760
    %62 = vmatpush.msra.mxu0 %v61
    %v63 = vand.u32 %v25, 4294901760
    %64 = vmatpush.msra.mxu0 %v63
    %v65 = vand.u32 %v24, 4294901760
    %66 = vmatpush.msra.mxu0 %v65
    %v67 = vand.u32 %v23, 4294901760
    %68 = vmatpush.msra.mxu0 %v67
    %v69 = vand.u32 %v22, 4294901760
    %70 = vmatpush.msra.mxu0 %v69
    %v71 = vand.u32 %v21, 4294901760
    %v72 = vsub.f32 %v21, %v71
    %v73 = vand.u32 %v72, 4294901760
    %v74 = vsub.f32 %v72, %v73
    %v75 = vand.u32 %v74, 4294901760
    %76 = vmatmul.f32.gmra.mxu0 %v75
    %v77 = vpop.f32.mrf.mxu0
    %v78 = vadd.f32 0.0, %v77
    %79 = vdwg.mxu0
    %v80 = vand.u32 %v37, 4294901760
    %v81 = vsub.f32 %v37, %v80
    %v82 = vand.u32 %v81, 4294901760
    %v83 = vsub.f32 %v81, %v82
    %v84 = vand.u32 %v83, 4294901760
    %85 = vmatpush.msra.mxu0 %v84
    %v86 = vand.u32 %v36, 4294901760
    %v87 = vsub.f32 %v36, %v86
    %v88 = vand.u32 %v87, 4294901760
    %v89 = vsub.f32 %v87, %v88
    %v90 = vand.u32 %v89, 4294901760
    %91 = vmatpush.msra.mxu0 %v90
    %v92 = vand.u32 %v35, 4294901760
    %v93 = vsub.f32 %v35, %v92
    %v94 = vand.u32 %v93, 4294901760
    %v95 = vsub.f32 %v93, %v94
    %v96 = vand.u32 %v95, 4294901760
    %97 = vmatpush.msra.mxu0 %v96
    %v98 = vand.u32 %v34, 4294901760
    %v99 = vsub.f32 %v34, %v98
    %v100 = vand.u32 %v99, 4294901760
    %v101 = vsub.f32 %v99, %v100
    %v102 = vand.u32 %v101, 4294901760
    %103 = vmatpush.msra.mxu0 %v102
    %v104 = vand.u32 %v33, 4294901760
    %v105 = vsub.f32 %v33, %v104
    %v106 = vand.u32 %v105, 4294901760
    %v107 = vsub.f32 %v105, %v106
    %v108 = vand.u32 %v107, 4294901760
    %109 = vmatpush.msra.mxu0 %v108
    %v110 = vand.u32 %v32, 4294901760
    %v111 = vsub.f32 %v32, %v110
    %v112 = vand.u32 %v111, 4294901760
    %v113 = vsub.f32 %v111, %v112
    %v114 = vand.u32 %v113, 4294901760
    %115 = vmatpush.msra.mxu0 %v114
    %v116 = vand.u32 %v31, 4294901760
    %v117 = vsub.f32 %v31, %v116
    %v118 = vand.u32 %v117, 4294901760
    %v119 = vsub.f32 %v117, %v118
    %v120 = vand.u32 %v119, 4294901760
    %121 = vmatpush.msra.mxu0 %v120
    %v122 = vand.u32 %v30, 4294901760
    %v123 = vsub.f32 %v30, %v122
    %v124 = vand.u32 %v123, 4294901760
    %v125 = vsub.f32 %v123, %v124
    %v126 = vand.u32 %v125, 4294901760
    %127 = vmatpush.msra.mxu0 %v126
    %v128 = vand.u32 %v29, 4294901760
    %v129 = vsub.f32 %v29, %v128
    %v130 = vand.u32 %v129, 4294901760
    %v131 = vsub.f32 %v129, %v130
    %v132 = vand.u32 %v131, 4294901760
    %133 = vmatpush.msra.mxu0 %v132
    %v134 = vand.u32 %v28, 4294901760
    %v135 = vsub.f32 %v28, %v134
    %v136 = vand.u32 %v135, 4294901760
    %v137 = vsub.f32 %v135, %v136
    %v138 = vand.u32 %v137, 4294901760
    %139 = vmatpush.msra.mxu0 %v138
    %v140 = vand.u32 %v27, 4294901760
    %v141 = vsub.f32 %v27, %v140
    %v142 = vand.u32 %v141, 4294901760
    %v143 = vsub.f32 %v141, %v142
    %v144 = vand.u32 %v143, 4294901760
    %145 = vmatpush.msra.mxu0 %v144
    %v146 = vand.u32 %v26, 4294901760
    %v147 = vsub.f32 %v26, %v146
    %v148 = vand.u32 %v147, 4294901760
    %v149 = vsub.f32 %v147, %v148
    %v150 = vand.u32 %v149, 4294901760
    %151 = vmatpush.msra.mxu0 %v150
    %v152 = vand.u32 %v25, 4294901760
    %v153 = vsub.f32 %v25, %v152
    %v154 = vand.u32 %v153, 4294901760
    %v155 = vsub.f32 %v153, %v154
    %v156 = vand.u32 %v155, 4294901760
    %157 = vmatpush.msra.mxu0 %v156
    %v158 = vand.u32 %v24, 4294901760
    %v159 = vsub.f32 %v24, %v158
    %v160 = vand.u32 %v159, 4294901760
    %v161 = vsub.f32 %v159, %v160
    %v162 = vand.u32 %v161, 4294901760
    %163 = vmatpush.msra.mxu0 %v162
    %v164 = vand.u32 %v23, 4294901760
    %v165 = vsub.f32 %v23, %v164
    %v166 = vand.u32 %v165, 4294901760
    %v167 = vsub.f32 %v165, %v166
    %v168 = vand.u32 %v167, 4294901760
    %169 = vmatpush.msra.mxu0 %v168
    %v170 = vand.u32 %v22, 4294901760
    %v171 = vsub.f32 %v22, %v170
    %v172 = vand.u32 %v171, 4294901760
    %v173 = vsub.f32 %v171, %v172
    %v174 = vand.u32 %v173, 4294901760
    %175 = vmatpush.msra.mxu0 %v174
    %v176 = vand.u32 %v21, 4294901760
    %177 = vmatmul.f32.gmra.mxu0 %v176
    %v178 = vpop.f32.mrf.mxu0
    %v179 = vadd.f32 %v78, %v178
    %180 = vdwg.mxu0
    %v181 = vand.u32 %v37, 4294901760
    %v182 = vsub.f32 %v37, %v181
    %183 = vmatpush.msra.mxu0 %v182
    %v184 = vand.u32 %v36, 4294901760
    %v185 = vsub.f32 %v36, %v184
    %186 = vmatpush.msra.mxu0 %v185
    %v187 = vand.u32 %v35, 4294901760
    %v188 = vsub.f32 %v35, %v187
    %189 = vmatpush.msra.mxu0 %v188
    %v190 = vand.u32 %v34, 4294901760
    %v191 = vsub.f32 %v34, %v190
    %192 = vmatpush.msra.mxu0 %v191
    %v193 = vand.u32 %v33, 4294901760
    %v194 = vsub.f32 %v33, %v193
    %195 = vmatpush.msra.mxu0 %v194
    %v196 = vand.u32 %v32, 4294901760
    %v197 = vsub.f32 %v32, %v196
    %198 = vmatpush.msra.mxu0 %v197
    %v199 = vand.u32 %v31, 4294901760
    %v200 = vsub.f32 %v31, %v199
    %201 = vmatpush.msra.mxu0 %v200
    %v202 = vand.u32 %v30, 4294901760
    %v203 = vsub.f32 %v30, %v202
    %204 = vmatpush.msra.mxu0 %v203
    %v205 = vand.u32 %v29, 4294901760
    %v206 = vsub.f32 %v29, %v205
    %207 = vmatpush.msra.mxu0 %v206
    %v208 = vand.u32 %v28, 4294901760
    %v209 = vsub.f32 %v28, %v208
    %210 = vmatpush.msra.mxu0 %v209
    %v211 = vand.u32 %v27, 4294901760
    %v212 = vsub.f32 %v27, %v211
    %213 = vmatpush.msra.mxu0 %v212
    %v214 = vand.u32 %v26, 4294901760
    %v215 = vsub.f32 %v26, %v214
    %216 = vmatpush.msra.mxu0 %v215
    %v217 = vand.u32 %v25, 4294901760
    %v218 = vsub.f32 %v25, %v217
    %219 = vmatpush.msra.mxu0 %v218
    %v220 = vand.u32 %v24, 4294901760
    %v221 = vsub.f32 %v24, %v220
    %222 = vmatpush.msra.mxu0 %v221
    %v223 = vand.u32 %v23, 4294901760
    %v224 = vsub.f32 %v23, %v223
    %225 = vmatpush.msra.mxu0 %v224
    %v226 = vand.u32 %v22, 4294901760
    %v227 = vsub.f32 %v22, %v226
    %228 = vmatpush.msra.mxu0 %v227
    %v229 = vand.u32 %v21, 4294901760
    %v230 = vsub.f32 %v21, %v229
    %231 = vmatmul.f32.gmra.mxu0 %v230
    %v232 = vpop.f32.mrf.mxu0
    %v233 = vadd.f32 %v179, %v232
    %234 = vdwg.mxu0
    %v235 = vand.u32 %v37, 4294901760
    %236 = vmatpush.msra.mxu0 %v235
    %v237 = vand.u32 %v36, 4294901760
    %238 = vmatpush.msra.mxu0 %v237
    %v239 = vand.u32 %v35, 4294901760
    %240 = vmatpush.msra.mxu0 %v239
    %v241 = vand.u32 %v34, 4294901760
    %242 = vmatpush.msra.mxu0 %v241
    %v243 = vand.u32 %v33, 4294901760
    %244 = vmatpush.msra.mxu0 %v243
    %v245 = vand.u32 %v32, 4294901760
    %246 = vmatpush.msra.mxu0 %v245
    %v247 = vand.u32 %v31, 4294901760
    %248 = vmatpush.msra.mxu0 %v247
    %v249 = vand.u32 %v30, 4294901760
    %250 = vmatpush.msra.mxu0 %v249
    %v251 = vand.u32 %v29, 4294901760
    %252 = vmatpush.msra.mxu0 %v251
    %v253 = vand.u32 %v28, 4294901760
    %254 = vmatpush.msra.mxu0 %v253
    %v255 = vand.u32 %v27, 4294901760
    %256 = vmatpush.msra.mxu0 %v255
    %v257 = vand.u32 %v26, 4294901760
    %258 = vmatpush.msra.mxu0 %v257
    %v259 = vand.u32 %v25, 4294901760
    %260 = vmatpush.msra.mxu0 %v259
    %v261 = vand.u32 %v24, 4294901760
    %262 = vmatpush.msra.mxu0 %v261
    %v263 = vand.u32 %v23, 4294901760
    %264 = vmatpush.msra.mxu0 %v263
    %v265 = vand.u32 %v22, 4294901760
    %266 = vmatpush.msra.mxu0 %v265
    %v267 = vand.u32 %v21, 4294901760
    %v268 = vsub.f32 %v21, %v267
    %v269 = vand.u32 %v268, 4294901760
    %270 = vmatmul.f32.gmra.mxu0 %v269
    %v271 = vpop.f32.mrf.mxu0
    %v272 = vadd.f32 %v233, %v271
    %273 = vdwg.mxu0
    %v274 = vand.u32 %v37, 4294901760
    %v275 = vsub.f32 %v37, %v274
    %v276 = vand.u32 %v275, 4294901760
    %277 = vmatpush.msra.mxu0 %v276
    %v278 = vand.u32 %v36, 4294901760
    %v279 = vsub.f32 %v36, %v278
    %v280 = vand.u32 %v279, 4294901760
    %281 = vmatpush.msra.mxu0 %v280
    %v282 = vand.u32 %v35, 4294901760
    %v283 = vsub.f32 %v35, %v282
    %v284 = vand.u32 %v283, 4294901760
    %285 = vmatpush.msra.mxu0 %v284
    %v286 = vand.u32 %v34, 4294901760
    %v287 = vsub.f32 %v34, %v286
    %v288 = vand.u32 %v287, 4294901760
    %289 = vmatpush.msra.mxu0 %v288
    %v290 = vand.u32 %v33, 4294901760
    %v291 = vsub.f32 %v33, %v290
    %v292 = vand.u32 %v291, 4294901760
    %293 = vmatpush.msra.mxu0 %v292
    %v294 = vand.u32 %v32, 4294901760
    %v295 = vsub.f32 %v32, %v294
    %v296 = vand.u32 %v295, 4294901760
    %297 = vmatpush.msra.mxu0 %v296
    %v298 = vand.u32 %v31, 4294901760
    %v299 = vsub.f32 %v31, %v298
    %v300 = vand.u32 %v299, 4294901760
    %301 = vmatpush.msra.mxu0 %v300
    %v302 = vand.u32 %v30, 4294901760
    %v303 = vsub.f32 %v30, %v302
    %v304 = vand.u32 %v303, 4294901760
    %305 = vmatpush.msra.mxu0 %v304
    %v306 = vand.u32 %v29, 4294901760
    %v307 = vsub.f32 %v29, %v306
    %v308 = vand.u32 %v307, 4294901760
    %309 = vmatpush.msra.mxu0 %v308
    %v310 = vand.u32 %v28, 4294901760
    %v311 = vsub.f32 %v28, %v310
    %v312 = vand.u32 %v311, 4294901760
    %313 = vmatpush.msra.mxu0 %v312
    %v314 = vand.u32 %v27, 4294901760
    %v315 = vsub.f32 %v27, %v314
    %v316 = vand.u32 %v315, 4294901760
    %317 = vmatpush.msra.mxu0 %v316
    %v318 = vand.u32 %v26, 4294901760
    %v319 = vsub.f32 %v26, %v318
    %v320 = vand.u32 %v319, 4294901760
    %321 = vmatpush.msra.mxu0 %v320
    %v322 = vand.u32 %v25, 4294901760
    %v323 = vsub.f32 %v25, %v322
    %v324 = vand.u32 %v323, 4294901760
    %325 = vmatpush.msra.mxu0 %v324
    %v326 = vand.u32 %v24, 4294901760
    %v327 = vsub.f32 %v24, %v326
    %v328 = vand.u32 %v327, 4294901760
    %329 = vmatpush.msra.mxu0 %v328
    %v330 = vand.u32 %v23, 4294901760
    %v331 = vsub.f32 %v23, %v330
    %v332 = vand.u32 %v331, 4294901760
    %333 = vmatpush.msra.mxu0 %v332
    %v334 = vand.u32 %v22, 4294901760
    %v335 = vsub.f32 %v22, %v334
    %v336 = vand.u32 %v335, 4294901760
    %337 = vmatpush.msra.mxu0 %v336
    %v338 = vand.u32 %v21, 4294901760
    %339 = vmatmul.f32.gmra.mxu0 %v338
    %v340 = vpop.f32.mrf.mxu0
    %v341 = vadd.f32 %v272, %v340
    %342 = vdwg.mxu0
    %v343 = vand.u32 %v37, 4294901760
    %344 = vmatpush.msra.mxu0 %v343
    %v345 = vand.u32 %v36, 4294901760
    %346 = vmatpush.msra.mxu0 %v345
    %v347 = vand.u32 %v35, 4294901760
    %348 = vmatpush.msra.mxu0 %v347
    %v349 = vand.u32 %v34, 4294901760
    %350 = vmatpush.msra.mxu0 %v349
    %v351 = vand.u32 %v33, 4294901760
    %352 = vmatpush.msra.mxu0 %v351
    %v353 = vand.u32 %v32, 4294901760
    %354 = vmatpush.msra.mxu0 %v353
    %v355 = vand.u32 %v31, 4294901760
    %356 = vmatpush.msra.mxu0 %v355
    %v357 = vand.u32 %v30, 4294901760
    %358 = vmatpush.msra.mxu0 %v357
    %v359 = vand.u32 %v29, 4294901760
    %360 = vmatpush.msra.mxu0 %v359
    %v361 = vand.u32 %v28, 4294901760
    %362 = vmatpush.msra.mxu0 %v361
    %v363 = vand.u32 %v27, 4294901760
    %364 = vmatpush.msra.mxu0 %v363
    %v365 = vand.u32 %v26, 4294901760
    %366 = vmatpush.msra.mxu0 %v365
    %v367 = vand.u32 %v25, 4294901760
    %368 = vmatpush.msra.mxu0 %v367
    %v369 = vand.u32 %v24, 4294901760
    %370 = vmatpush.msra.mxu0 %v369
    %v371 = vand.u32 %v23, 4294901760
    %372 = vmatpush.msra.mxu0 %v371
    %v373 = vand.u32 %v22, 4294901760
    %374 = vmatpush.msra.mxu0 %v373
    %v375 = vand.u32 %v21, 4294901760
    %376 = vmatmul.f32.gmra.mxu0 %v375
    %v377 = vpop.f32.mrf.mxu0
    %v378 = vadd.f32 %v341, %v377
    %379 = vdwg.mxu0
    %v380 = vmul.f32 %v378, 0.03125
    %vm381 = vcmask 31744
    %v383 = vsel %vm381, %v380, 0
    %vm385 = vcmask 1043456
    %v387 = vsel %vm385, %v38, 0
    %389 = vmatpush.msra.mxu0 0.0
    %390 = vmatpush.msra.mxu0 0.0
    %391 = vmatpush.msra.mxu0 0.0
    %392 = vmatpush.msra.mxu0 0.0
    %393 = vmatpush.msra.mxu0 0.0
    %394 = vmatpush.msra.mxu0 0.0
    %395 = vmatpush.msra.mxu0 0.0
    %396 = vmatpush.msra.mxu0 0.0
    %397 = vmatpush.msra.mxu0 0.0
    %398 = vmatpush.msra.mxu0 0.0
    %399 = vmatpush.msra.mxu0 0.0
    %400 = vmatpush.msra.mxu0 0.0
    %401 = vmatpush.msra.mxu0 0.0
    %402 = vmatpush.msra.mxu0 0.0
    %403 = vmatpush.msra.mxu0 0.0
    %v404 = vand.u32 %v387, 4294901760
    %405 = vmatpush.msra.mxu0 %v404
    %v406 = vand.u32 %v383, 4294901760
    %v407 = vsub.f32 %v383, %v406
    %v408 = vand.u32 %v407, 4294901760
    %v409 = vsub.f32 %v407, %v408
    %v410 = vand.u32 %v409, 4294901760
    %411 = vmatmul.f32.gmra.mxu0 %v410
    %v412 = vpop.f32.mrf.mxu0
    %v413 = vadd.f32 0.0, %v412
    %414 = vdwg.mxu0
    %415 = vmatpush.msra.mxu0 0.0
    %416 = vmatpush.msra.mxu0 0.0
    %417 = vmatpush.msra.mxu0 0.0
    %418 = vmatpush.msra.mxu0 0.0
    %419 = vmatpush.msra.mxu0 0.0
    %420 = vmatpush.msra.mxu0 0.0
    %421 = vmatpush.msra.mxu0 0.0
    %422 = vmatpush.msra.mxu0 0.0
    %423 = vmatpush.msra.mxu0 0.0
    %424 = vmatpush.msra.mxu0 0.0
    %425 = vmatpush.msra.mxu0 0.0
    %426 = vmatpush.msra.mxu0 0.0
    %427 = vmatpush.msra.mxu0 0.0
    %428 = vmatpush.msra.mxu0 0.0
    %429 = vmatpush.msra.mxu0 0.0
    %v430 = vand.u32 %v387, 4294901760
    %v431 = vsub.f32 %v387, %v430
    %v432 = vand.u32 %v431, 4294901760
    %v433 = vsub.f32 %v431, %v432
    %v434 = vand.u32 %v433, 4294901760
    %435 = vmatpush.msra.mxu0 %v434
    %v436 = vand.u32 %v383, 4294901760
    %437 = vmatmul.f32.gmra.mxu0 %v436
    %v438 = vpop.f32.mrf.mxu0
    %v439 = vadd.f32 %v413, %v438
    %440 = vdwg.mxu0
    %441 = vmatpush.msra.mxu0 0.0
    %442 = vmatpush.msra.mxu0 0.0
    %443 = vmatpush.msra.mxu0 0.0
    %444 = vmatpush.msra.mxu0 0.0
    %445 = vmatpush.msra.mxu0 0.0
    %446 = vmatpush.msra.mxu0 0.0
    %447 = vmatpush.msra.mxu0 0.0
    %448 = vmatpush.msra.mxu0 0.0
    %449 = vmatpush.msra.mxu0 0.0
    %450 = vmatpush.msra.mxu0 0.0
    %451 = vmatpush.msra.mxu0 0.0
    %452 = vmatpush.msra.mxu0 0.0
    %453 = vmatpush.msra.mxu0 0.0
    %454 = vmatpush.msra.mxu0 0.0
    %455 = vmatpush.msra.mxu0 0.0
    %v456 = vand.u32 %v387, 4294901760
    %v457 = vsub.f32 %v387, %v456
    %458 = vmatpush.msra.mxu0 %v457
    %v459 = vand.u32 %v383, 4294901760
    %v460 = vsub.f32 %v383, %v459
    %461 = vmatmul.f32.gmra.mxu0 %v460
    %v462 = vpop.f32.mrf.mxu0
    %v463 = vadd.f32 %v439, %v462
    %464 = vdwg.mxu0
    %465 = vmatpush.msra.mxu0 0.0
    %466 = vmatpush.msra.mxu0 0.0
    %467 = vmatpush.msra.mxu0 0.0
    %468 = vmatpush.msra.mxu0 0.0
    %469 = vmatpush.msra.mxu0 0.0
    %470 = vmatpush.msra.mxu0 0.0
    %471 = vmatpush.msra.mxu0 0.0
    %472 = vmatpush.msra.mxu0 0.0
    %473 = vmatpush.msra.mxu0 0.0
    %474 = vmatpush.msra.mxu0 0.0
    %475 = vmatpush.msra.mxu0 0.0
    %476 = vmatpush.msra.mxu0 0.0
    %477 = vmatpush.msra.mxu0 0.0
    %478 = vmatpush.msra.mxu0 0.0
    %479 = vmatpush.msra.mxu0 0.0
    %v480 = vand.u32 %v387, 4294901760
    %481 = vmatpush.msra.mxu0 %v480
    %v482 = vand.u32 %v383, 4294901760
    %v483 = vsub.f32 %v383, %v482
    %v484 = vand.u32 %v483, 4294901760
    %485 = vmatmul.f32.gmra.mxu0 %v484
    %v486 = vpop.f32.mrf.mxu0
    %v487 = vadd.f32 %v463, %v486
    %488 = vdwg.mxu0
    %489 = vmatpush.msra.mxu0 0.0
    %490 = vmatpush.msra.mxu0 0.0
    %491 = vmatpush.msra.mxu0 0.0
    %492 = vmatpush.msra.mxu0 0.0
    %493 = vmatpush.msra.mxu0 0.0
    %494 = vmatpush.msra.mxu0 0.0
    %495 = vmatpush.msra.mxu0 0.0
    %496 = vmatpush.msra.mxu0 0.0
    %497 = vmatpush.msra.mxu0 0.0
    %498 = vmatpush.msra.mxu0 0.0
    %499 = vmatpush.msra.mxu0 0.0
    %500 = vmatpush.msra.mxu0 0.0
    %501 = vmatpush.msra.mxu0 0.0
    %502 = vmatpush.msra.mxu0 0.0
    %503 = vmatpush.msra.mxu0 0.0
    %v504 = vand.u32 %v387, 4294901760
    %v505 = vsub.f32 %v387, %v504
    %v506 = vand.u32 %v505, 4294901760
    %507 = vmatpush.msra.mxu0 %v506
    %v508 = vand.u32 %v383, 4294901760
    %509 = vmatmul.f32.gmra.mxu0 %v508
    %v510 = vpop.f32.mrf.mxu0
    %v511 = vadd.f32 %v487, %v510
    %512 = vdwg.mxu0
    %513 = vmatpush.msra.mxu0 0.0
    %514 = vmatpush.msra.mxu0 0.0
    %515 = vmatpush.msra.mxu0 0.0
    %516 = vmatpush.msra.mxu0 0.0
    %517 = vmatpush.msra.mxu0 0.0
    %518 = vmatpush.msra.mxu0 0.0
    %519 = vmatpush.msra.mxu0 0.0
    %520 = vmatpush.msra.mxu0 0.0
    %521 = vmatpush.msra.mxu0 0.0
    %522 = vmatpush.msra.mxu0 0.0
    %523 = vmatpush.msra.mxu0 0.0
    %524 = vmatpush.msra.mxu0 0.0
    %525 = vmatpush.msra.mxu0 0.0
    %526 = vmatpush.msra.mxu0 0.0
    %527 = vmatpush.msra.mxu0 0.0
    %v528 = vand.u32 %v387, 4294901760
    %529 = vmatpush.msra.mxu0 %v528
    %v530 = vand.u32 %v383, 4294901760
    %531 = vmatmul.f32.gmra.mxu0 %v530
    %v532 = vpop.f32.mrf.mxu0
    %v533 = vadd.f32 %v511, %v532
    %534 = vdwg.mxu0
    %v535 = vsub.f32 %v21, %v533
    %v536 = vmul.f32 %v535, %v535
    %v537 = vand.u32 %v37, 4294901760
    %538 = vmatpush.msra.mxu0 %v537
    %v539 = vand.u32 %v36, 4294901760
    %540 = vmatpush.msra.mxu0 %v539
    %v541 = vand.u32 %v35, 4294901760
    %542 = vmatpush.msra.mxu0 %v541
    %v543 = vand.u32 %v34, 4294901760
    %544 = vmatpush.msra.mxu0 %v543
    %v545 = vand.u32 %v33, 4294901760
    %546 = vmatpush.msra.mxu0 %v545
    %v547 = vand.u32 %v32, 4294901760
    %548 = vmatpush.msra.mxu0 %v547
    %v549 = vand.u32 %v31, 4294901760
    %550 = vmatpush.msra.mxu0 %v549
    %v551 = vand.u32 %v30, 4294901760
    %552 = vmatpush.msra.mxu0 %v551
    %v553 = vand.u32 %v29, 4294901760
    %554 = vmatpush.msra.mxu0 %v553
    %v555 = vand.u32 %v28, 4294901760
    %556 = vmatpush.msra.mxu0 %v555
    %v557 = vand.u32 %v27, 4294901760
    %558 = vmatpush.msra.mxu0 %v557
    %v559 = vand.u32 %v26, 4294901760
    %560 = vmatpush.msra.mxu0 %v559
    %v561 = vand.u32 %v25, 4294901760
    %562 = vmatpush.msra.mxu0 %v561
    %v563 = vand.u32 %v24, 4294901760
    %564 = vmatpush.msra.mxu0 %v563
    %v565 = vand.u32 %v23, 4294901760
    %566 = vmatpush.msra.mxu0 %v565
    %v567 = vand.u32 %v22, 4294901760
    %568 = vmatpush.msra.mxu0 %v567
    %v569 = vand.u32 %v536, 4294901760
    %v570 = vsub.f32 %v536, %v569
    %v571 = vand.u32 %v570, 4294901760
    %v572 = vsub.f32 %v570, %v571
    %v573 = vand.u32 %v572, 4294901760
    %574 = vmatmul.f32.gmra.mxu0 %v573
    %v575 = vpop.f32.mrf.mxu0
    %v576 = vadd.f32 0.0, %v575
    %577 = vdwg.mxu0
    %v578 = vand.u32 %v37, 4294901760
    %v579 = vsub.f32 %v37, %v578
    %v580 = vand.u32 %v579, 4294901760
    %v581 = vsub.f32 %v579, %v580
    %v582 = vand.u32 %v581, 4294901760
    %583 = vmatpush.msra.mxu0 %v582
    %v584 = vand.u32 %v36, 4294901760
    %v585 = vsub.f32 %v36, %v584
    %v586 = vand.u32 %v585, 4294901760
    %v587 = vsub.f32 %v585, %v586
    %v588 = vand.u32 %v587, 4294901760
    %589 = vmatpush.msra.mxu0 %v588
    %v590 = vand.u32 %v35, 4294901760
    %v591 = vsub.f32 %v35, %v590
    %v592 = vand.u32 %v591, 4294901760
    %v593 = vsub.f32 %v591, %v592
    %v594 = vand.u32 %v593, 4294901760
    %595 = vmatpush.msra.mxu0 %v594
    %v596 = vand.u32 %v34, 4294901760
    %v597 = vsub.f32 %v34, %v596
    %v598 = vand.u32 %v597, 4294901760
    %v599 = vsub.f32 %v597, %v598
    %v600 = vand.u32 %v599, 4294901760
    %601 = vmatpush.msra.mxu0 %v600
    %v602 = vand.u32 %v33, 4294901760
    %v603 = vsub.f32 %v33, %v602
    %v604 = vand.u32 %v603, 4294901760
    %v605 = vsub.f32 %v603, %v604
    %v606 = vand.u32 %v605, 4294901760
    %607 = vmatpush.msra.mxu0 %v606
    %v608 = vand.u32 %v32, 4294901760
    %v609 = vsub.f32 %v32, %v608
    %v610 = vand.u32 %v609, 4294901760
    %v611 = vsub.f32 %v609, %v610
    %v612 = vand.u32 %v611, 4294901760
    %613 = vmatpush.msra.mxu0 %v612
    %v614 = vand.u32 %v31, 4294901760
    %v615 = vsub.f32 %v31, %v614
    %v616 = vand.u32 %v615, 4294901760
    %v617 = vsub.f32 %v615, %v616
    %v618 = vand.u32 %v617, 4294901760
    %619 = vmatpush.msra.mxu0 %v618
    %v620 = vand.u32 %v30, 4294901760
    %v621 = vsub.f32 %v30, %v620
    %v622 = vand.u32 %v621, 4294901760
    %v623 = vsub.f32 %v621, %v622
    %v624 = vand.u32 %v623, 4294901760
    %625 = vmatpush.msra.mxu0 %v624
    %v626 = vand.u32 %v29, 4294901760
    %v627 = vsub.f32 %v29, %v626
    %v628 = vand.u32 %v627, 4294901760
    %v629 = vsub.f32 %v627, %v628
    %v630 = vand.u32 %v629, 4294901760
    %631 = vmatpush.msra.mxu0 %v630
    %v632 = vand.u32 %v28, 4294901760
    %v633 = vsub.f32 %v28, %v632
    %v634 = vand.u32 %v633, 4294901760
    %v635 = vsub.f32 %v633, %v634
    %v636 = vand.u32 %v635, 4294901760
    %637 = vmatpush.msra.mxu0 %v636
    %v638 = vand.u32 %v27, 4294901760
    %v639 = vsub.f32 %v27, %v638
    %v640 = vand.u32 %v639, 4294901760
    %v641 = vsub.f32 %v639, %v640
    %v642 = vand.u32 %v641, 4294901760
    %643 = vmatpush.msra.mxu0 %v642
    %v644 = vand.u32 %v26, 4294901760
    %v645 = vsub.f32 %v26, %v644
    %v646 = vand.u32 %v645, 4294901760
    %v647 = vsub.f32 %v645, %v646
    %v648 = vand.u32 %v647, 4294901760
    %649 = vmatpush.msra.mxu0 %v648
    %v650 = vand.u32 %v25, 4294901760
    %v651 = vsub.f32 %v25, %v650
    %v652 = vand.u32 %v651, 4294901760
    %v653 = vsub.f32 %v651, %v652
    %v654 = vand.u32 %v653, 4294901760
    %655 = vmatpush.msra.mxu0 %v654
    %v656 = vand.u32 %v24, 4294901760
    %v657 = vsub.f32 %v24, %v656
    %v658 = vand.u32 %v657, 4294901760
    %v659 = vsub.f32 %v657, %v658
    %v660 = vand.u32 %v659, 4294901760
    %661 = vmatpush.msra.mxu0 %v660
    %v662 = vand.u32 %v23, 4294901760
    %v663 = vsub.f32 %v23, %v662
    %v664 = vand.u32 %v663, 4294901760
    %v665 = vsub.f32 %v663, %v664
    %v666 = vand.u32 %v665, 4294901760
    %667 = vmatpush.msra.mxu0 %v666
    %v668 = vand.u32 %v22, 4294901760
    %v669 = vsub.f32 %v22, %v668
    %v670 = vand.u32 %v669, 4294901760
    %v671 = vsub.f32 %v669, %v670
    %v672 = vand.u32 %v671, 4294901760
    %673 = vmatpush.msra.mxu0 %v672
    %v674 = vand.u32 %v536, 4294901760
    %675 = vmatmul.f32.gmra.mxu0 %v674
    %v676 = vpop.f32.mrf.mxu0
    %v677 = vadd.f32 %v576, %v676
    %678 = vdwg.mxu0
    %v679 = vand.u32 %v37, 4294901760
    %v680 = vsub.f32 %v37, %v679
    %681 = vmatpush.msra.mxu0 %v680
    %v682 = vand.u32 %v36, 4294901760
    %v683 = vsub.f32 %v36, %v682
    %684 = vmatpush.msra.mxu0 %v683
    %v685 = vand.u32 %v35, 4294901760
    %v686 = vsub.f32 %v35, %v685
    %687 = vmatpush.msra.mxu0 %v686
    %v688 = vand.u32 %v34, 4294901760
    %v689 = vsub.f32 %v34, %v688
    %690 = vmatpush.msra.mxu0 %v689
    %v691 = vand.u32 %v33, 4294901760
    %v692 = vsub.f32 %v33, %v691
    %693 = vmatpush.msra.mxu0 %v692
    %v694 = vand.u32 %v32, 4294901760
    %v695 = vsub.f32 %v32, %v694
    %696 = vmatpush.msra.mxu0 %v695
    %v697 = vand.u32 %v31, 4294901760
    %v698 = vsub.f32 %v31, %v697
    %699 = vmatpush.msra.mxu0 %v698
    %v700 = vand.u32 %v30, 4294901760
    %v701 = vsub.f32 %v30, %v700
    %702 = vmatpush.msra.mxu0 %v701
    %v703 = vand.u32 %v29, 4294901760
    %v704 = vsub.f32 %v29, %v703
    %705 = vmatpush.msra.mxu0 %v704
    %v706 = vand.u32 %v28, 4294901760
    %v707 = vsub.f32 %v28, %v706
    %708 = vmatpush.msra.mxu0 %v707
    %v709 = vand.u32 %v27, 4294901760
    %v710 = vsub.f32 %v27, %v709
    %711 = vmatpush.msra.mxu0 %v710
    %v712 = vand.u32 %v26, 4294901760
    %v713 = vsub.f32 %v26, %v712
    %714 = vmatpush.msra.mxu0 %v713
    %v715 = vand.u32 %v25, 4294901760
    %v716 = vsub.f32 %v25, %v715
    %717 = vmatpush.msra.mxu0 %v716
    %v718 = vand.u32 %v24, 4294901760
    %v719 = vsub.f32 %v24, %v718
    %720 = vmatpush.msra.mxu0 %v719
    %v721 = vand.u32 %v23, 4294901760
    %v722 = vsub.f32 %v23, %v721
    %723 = vmatpush.msra.mxu0 %v722
    %v724 = vand.u32 %v22, 4294901760
    %v725 = vsub.f32 %v22, %v724
    %726 = vmatpush.msra.mxu0 %v725
    %v727 = vand.u32 %v536, 4294901760
    %v728 = vsub.f32 %v536, %v727
    %729 = vmatmul.f32.gmra.mxu0 %v728
    %v730 = vpop.f32.mrf.mxu0
    %v731 = vadd.f32 %v677, %v730
    %732 = vdwg.mxu0
    %v733 = vand.u32 %v37, 4294901760
    %734 = vmatpush.msra.mxu0 %v733
    %v735 = vand.u32 %v36, 4294901760
    %736 = vmatpush.msra.mxu0 %v735
    %v737 = vand.u32 %v35, 4294901760
    %738 = vmatpush.msra.mxu0 %v737
    %v739 = vand.u32 %v34, 4294901760
    %740 = vmatpush.msra.mxu0 %v739
    %v741 = vand.u32 %v33, 4294901760
    %742 = vmatpush.msra.mxu0 %v741
    %v743 = vand.u32 %v32, 4294901760
    %744 = vmatpush.msra.mxu0 %v743
    %v745 = vand.u32 %v31, 4294901760
    %746 = vmatpush.msra.mxu0 %v745
    %v747 = vand.u32 %v30, 4294901760
    %748 = vmatpush.msra.mxu0 %v747
    %v749 = vand.u32 %v29, 4294901760
    %750 = vmatpush.msra.mxu0 %v749
    %v751 = vand.u32 %v28, 4294901760
    %752 = vmatpush.msra.mxu0 %v751
    %v753 = vand.u32 %v27, 4294901760
    %754 = vmatpush.msra.mxu0 %v753
    %v755 = vand.u32 %v26, 4294901760
    %756 = vmatpush.msra.mxu0 %v755
    %v757 = vand.u32 %v25, 4294901760
    %758 = vmatpush.msra.mxu0 %v757
    %v759 = vand.u32 %v24, 4294901760
    %760 = vmatpush.msra.mxu0 %v759
    %v761 = vand.u32 %v23, 4294901760
    %762 = vmatpush.msra.mxu0 %v761
    %v763 = vand.u32 %v22, 4294901760
    %764 = vmatpush.msra.mxu0 %v763
    %v765 = vand.u32 %v536, 4294901760
    %v766 = vsub.f32 %v536, %v765
    %v767 = vand.u32 %v766, 4294901760
    %768 = vmatmul.f32.gmra.mxu0 %v767
    %v769 = vpop.f32.mrf.mxu0
    %v770 = vadd.f32 %v731, %v769
    %771 = vdwg.mxu0
    %v772 = vand.u32 %v37, 4294901760
    %v773 = vsub.f32 %v37, %v772
    %v774 = vand.u32 %v773, 4294901760
    %775 = vmatpush.msra.mxu0 %v774
    %v776 = vand.u32 %v36, 4294901760
    %v777 = vsub.f32 %v36, %v776
    %v778 = vand.u32 %v777, 4294901760
    %779 = vmatpush.msra.mxu0 %v778
    %v780 = vand.u32 %v35, 4294901760
    %v781 = vsub.f32 %v35, %v780
    %v782 = vand.u32 %v781, 4294901760
    %783 = vmatpush.msra.mxu0 %v782
    %v784 = vand.u32 %v34, 4294901760
    %v785 = vsub.f32 %v34, %v784
    %v786 = vand.u32 %v785, 4294901760
    %787 = vmatpush.msra.mxu0 %v786
    %v788 = vand.u32 %v33, 4294901760
    %v789 = vsub.f32 %v33, %v788
    %v790 = vand.u32 %v789, 4294901760
    %791 = vmatpush.msra.mxu0 %v790
    %v792 = vand.u32 %v32, 4294901760
    %v793 = vsub.f32 %v32, %v792
    %v794 = vand.u32 %v793, 4294901760
    %795 = vmatpush.msra.mxu0 %v794
    %v796 = vand.u32 %v31, 4294901760
    %v797 = vsub.f32 %v31, %v796
    %v798 = vand.u32 %v797, 4294901760
    %799 = vmatpush.msra.mxu0 %v798
    %v800 = vand.u32 %v30, 4294901760
    %v801 = vsub.f32 %v30, %v800
    %v802 = vand.u32 %v801, 4294901760
    %803 = vmatpush.msra.mxu0 %v802
    %v804 = vand.u32 %v29, 4294901760
    %v805 = vsub.f32 %v29, %v804
    %v806 = vand.u32 %v805, 4294901760
    %807 = vmatpush.msra.mxu0 %v806
    %v808 = vand.u32 %v28, 4294901760
    %v809 = vsub.f32 %v28, %v808
    %v810 = vand.u32 %v809, 4294901760
    %811 = vmatpush.msra.mxu0 %v810
    %v812 = vand.u32 %v27, 4294901760
    %v813 = vsub.f32 %v27, %v812
    %v814 = vand.u32 %v813, 4294901760
    %815 = vmatpush.msra.mxu0 %v814
    %v816 = vand.u32 %v26, 4294901760
    %v817 = vsub.f32 %v26, %v816
    %v818 = vand.u32 %v817, 4294901760
    %819 = vmatpush.msra.mxu0 %v818
    %v820 = vand.u32 %v25, 4294901760
    %v821 = vsub.f32 %v25, %v820
    %v822 = vand.u32 %v821, 4294901760
    %823 = vmatpush.msra.mxu0 %v822
    %v824 = vand.u32 %v24, 4294901760
    %v825 = vsub.f32 %v24, %v824
    %v826 = vand.u32 %v825, 4294901760
    %827 = vmatpush.msra.mxu0 %v826
    %v828 = vand.u32 %v23, 4294901760
    %v829 = vsub.f32 %v23, %v828
    %v830 = vand.u32 %v829, 4294901760
    %831 = vmatpush.msra.mxu0 %v830
    %v832 = vand.u32 %v22, 4294901760
    %v833 = vsub.f32 %v22, %v832
    %v834 = vand.u32 %v833, 4294901760
    %835 = vmatpush.msra.mxu0 %v834
    %v836 = vand.u32 %v536, 4294901760
    %837 = vmatmul.f32.gmra.mxu0 %v836
    %v838 = vpop.f32.mrf.mxu0
    %v839 = vadd.f32 %v770, %v838
    %840 = vdwg.mxu0
    %v841 = vand.u32 %v37, 4294901760
    %842 = vmatpush.msra.mxu0 %v841
    %v843 = vand.u32 %v36, 4294901760
    %844 = vmatpush.msra.mxu0 %v843
    %v845 = vand.u32 %v35, 4294901760
    %846 = vmatpush.msra.mxu0 %v845
    %v847 = vand.u32 %v34, 4294901760
    %848 = vmatpush.msra.mxu0 %v847
    %v849 = vand.u32 %v33, 4294901760
    %850 = vmatpush.msra.mxu0 %v849
    %v851 = vand.u32 %v32, 4294901760
    %852 = vmatpush.msra.mxu0 %v851
    %v853 = vand.u32 %v31, 4294901760
    %854 = vmatpush.msra.mxu0 %v853
    %v855 = vand.u32 %v30, 4294901760
    %856 = vmatpush.msra.mxu0 %v855
    %v857 = vand.u32 %v29, 4294901760
    %858 = vmatpush.msra.mxu0 %v857
    %v859 = vand.u32 %v28, 4294901760
    %860 = vmatpush.msra.mxu0 %v859
    %v861 = vand.u32 %v27, 4294901760
    %862 = vmatpush.msra.mxu0 %v861
    %v863 = vand.u32 %v26, 4294901760
    %864 = vmatpush.msra.mxu0 %v863
    %v865 = vand.u32 %v25, 4294901760
    %866 = vmatpush.msra.mxu0 %v865
    %v867 = vand.u32 %v24, 4294901760
    %868 = vmatpush.msra.mxu0 %v867
    %v869 = vand.u32 %v23, 4294901760
    %870 = vmatpush.msra.mxu0 %v869
    %v871 = vand.u32 %v22, 4294901760
    %872 = vmatpush.msra.mxu0 %v871
    %v873 = vand.u32 %v536, 4294901760
    %874 = vmatmul.f32.gmra.mxu0 %v873
    %v875 = vpop.f32.mrf.mxu0
    %v876 = vadd.f32 %v839, %v875
    %877 = vdwg.mxu0
    %v878 = vmul.f32 %v876, 0.032258064
    %v879 = vrsqrt.pop %v878
    %v880 = vmul.f32 %v879, %v878
    %v881 = vmul.f32 %v880, %v879
    %v882 = vmul.f32 0.5, %v881
    %v883 = vsub.f32 1.5, %v882
    %v884 = vmul.f32 %v879, %v883
    %v885 = vmul.f32 %v878, %v884
    %vm886 = vcmp.eq.f32.partialorder %v878, inf
    %v887 = vsel %vm886, %v878, %v885
    %vm888 = vcmp.eq.f32.partialorder %v878, 0.0
    %v889 = vand.u32 %v878, 2147483648
    %v890 = vsel %vm888, %v889, %v887
    %v891 = vadd.f32 %v890, 1e-06
    %v892 = vrcp.pop %v891
    %v893 = vmul.f32 %v891, %v892
    %v894 = vsub.f32 1.0, %v893
    %v895 = vmul.f32 %v892, %v894
    %v896 = vadd.f32 %v892, %v895
    %vm897 = vweird.f32 %v891
    %vm898 = vweird.f32 %v892
    %vm899 = vmor %vm897, %vm898
    %v900 = vsel %vm899, %v892, %v896
    %v901 = vand.u32 2147483647, %v891
    %vm902 = vcmp.eq.f32.partialorder %v901, 8.507059e+37
    %v903 = vand.u32 %v891, 2147483648
    %v904 = vor.u32 1.1754944e-38, %v903
    %v905 = vsel %vm902, %v904, %v900
    %v906 = vmul.f32 1.0, %v905
    %v908 = vsel %vm381, %v906, 0
    %910 = vmatpush.msra.mxu0 0.0
    %911 = vmatpush.msra.mxu0 0.0
    %912 = vmatpush.msra.mxu0 0.0
    %913 = vmatpush.msra.mxu0 0.0
    %914 = vmatpush.msra.mxu0 0.0
    %915 = vmatpush.msra.mxu0 0.0
    %916 = vmatpush.msra.mxu0 0.0
    %917 = vmatpush.msra.mxu0 0.0
    %918 = vmatpush.msra.mxu0 0.0
    %919 = vmatpush.msra.mxu0 0.0
    %920 = vmatpush.msra.mxu0 0.0
    %921 = vmatpush.msra.mxu0 0.0
    %922 = vmatpush.msra.mxu0 0.0
    %923 = vmatpush.msra.mxu0 0.0
    %924 = vmatpush.msra.mxu0 0.0
    %v925 = vand.u32 %v387, 4294901760
    %926 = vmatpush.msra.mxu0 %v925
    %v927 = vand.u32 %v908, 4294901760
    %v928 = vsub.f32 %v908, %v927
    %v929 = vand.u32 %v928, 4294901760
    %v930 = vsub.f32 %v928, %v929
    %v931 = vand.u32 %v930, 4294901760
    %932 = vmatmul.f32.gmra.mxu0 %v931
    %v933 = vpop.f32.mrf.mxu0
    %v934 = vadd.f32 0.0, %v933
    %935 = vdwg.mxu0
    %936 = vmatpush.msra.mxu0 0.0
    %937 = vmatpush.msra.mxu0 0.0
    %938 = vmatpush.msra.mxu0 0.0
    %939 = vmatpush.msra.mxu0 0.0
    %940 = vmatpush.msra.mxu0 0.0
    %941 = vmatpush.msra.mxu0 0.0
    %942 = vmatpush.msra.mxu0 0.0
    %943 = vmatpush.msra.mxu0 0.0
    %944 = vmatpush.msra.mxu0 0.0
    %945 = vmatpush.msra.mxu0 0.0
    %946 = vmatpush.msra.mxu0 0.0
    %947 = vmatpush.msra.mxu0 0.0
    %948 = vmatpush.msra.mxu0 0.0
    %949 = vmatpush.msra.mxu0 0.0
    %950 = vmatpush.msra.mxu0 0.0
    %v951 = vand.u32 %v387, 4294901760
    %v952 = vsub.f32 %v387, %v951
    %v953 = vand.u32 %v952, 4294901760
    %v954 = vsub.f32 %v952, %v953
    %v955 = vand.u32 %v954, 4294901760
    %956 = vmatpush.msra.mxu0 %v955
    %v957 = vand.u32 %v908, 4294901760
    %958 = vmatmul.f32.gmra.mxu0 %v957
    %v959 = vpop.f32.mrf.mxu0
    %v960 = vadd.f32 %v934, %v959
    %961 = vdwg.mxu0
    %962 = vmatpush.msra.mxu0 0.0
    %963 = vmatpush.msra.mxu0 0.0
    %964 = vmatpush.msra.mxu0 0.0
    %965 = vmatpush.msra.mxu0 0.0
    %966 = vmatpush.msra.mxu0 0.0
    %967 = vmatpush.msra.mxu0 0.0
    %968 = vmatpush.msra.mxu0 0.0
    %969 = vmatpush.msra.mxu0 0.0
    %970 = vmatpush.msra.mxu0 0.0
    %971 = vmatpush.msra.mxu0 0.0
    %972 = vmatpush.msra.mxu0 0.0
    %973 = vmatpush.msra.mxu0 0.0
    %974 = vmatpush.msra.mxu0 0.0
    %975 = vmatpush.msra.mxu0 0.0
    %976 = vmatpush.msra.mxu0 0.0
    %v977 = vand.u32 %v387, 4294901760
    %v978 = vsub.f32 %v387, %v977
    %979 = vmatpush.msra.mxu0 %v978
    %v980 = vand.u32 %v908, 4294901760
    %v981 = vsub.f32 %v908, %v980
    %982 = vmatmul.f32.gmra.mxu0 %v981
    %v983 = vpop.f32.mrf.mxu0
    %v984 = vadd.f32 %v960, %v983
    %985 = vdwg.mxu0
    %986 = vmatpush.msra.mxu0 0.0
    %987 = vmatpush.msra.mxu0 0.0
    %988 = vmatpush.msra.mxu0 0.0
    %989 = vmatpush.msra.mxu0 0.0
    %990 = vmatpush.msra.mxu0 0.0
    %991 = vmatpush.msra.mxu0 0.0
    %992 = vmatpush.msra.mxu0 0.0
    %993 = vmatpush.msra.mxu0 0.0
    %994 = vmatpush.msra.mxu0 0.0
    %995 = vmatpush.msra.mxu0 0.0
    %996 = vmatpush.msra.mxu0 0.0
    %997 = vmatpush.msra.mxu0 0.0
    %998 = vmatpush.msra.mxu0 0.0
    %999 = vmatpush.msra.mxu0 0.0
    %1000 = vmatpush.msra.mxu0 0.0
    %v1001 = vand.u32 %v387, 4294901760
    %1002 = vmatpush.msra.mxu0 %v1001
    %v1003 = vand.u32 %v908, 4294901760
    %v1004 = vsub.f32 %v908, %v1003
    %v1005 = vand.u32 %v1004, 4294901760
    %1006 = vmatmul.f32.gmra.mxu0 %v1005
    %v1007 = vpop.f32.mrf.mxu0
    %v1008 = vadd.f32 %v984, %v1007
    %1009 = vdwg.mxu0
    %1010 = vmatpush.msra.mxu0 0.0
    %1011 = vmatpush.msra.mxu0 0.0
    %1012 = vmatpush.msra.mxu0 0.0
    %1013 = vmatpush.msra.mxu0 0.0
    %1014 = vmatpush.msra.mxu0 0.0
    %1015 = vmatpush.msra.mxu0 0.0
    %1016 = vmatpush.msra.mxu0 0.0
    %1017 = vmatpush.msra.mxu0 0.0
    %1018 = vmatpush.msra.mxu0 0.0
    %1019 = vmatpush.msra.mxu0 0.0
    %1020 = vmatpush.msra.mxu0 0.0
    %1021 = vmatpush.msra.mxu0 0.0
    %1022 = vmatpush.msra.mxu0 0.0
    %1023 = vmatpush.msra.mxu0 0.0
    %1024 = vmatpush.msra.mxu0 0.0
    %v1025 = vand.u32 %v387, 4294901760
    %v1026 = vsub.f32 %v387, %v1025
    %v1027 = vand.u32 %v1026, 4294901760
    %1028 = vmatpush.msra.mxu0 %v1027
    %v1029 = vand.u32 %v908, 4294901760
    %1030 = vmatmul.f32.gmra.mxu0 %v1029
    %v1031 = vpop.f32.mrf.mxu0
    %v1032 = vadd.f32 %v1008, %v1031
    %1033 = vdwg.mxu0
    %1034 = vmatpush.msra.mxu0 0.0
    %1035 = vmatpush.msra.mxu0 0.0
    %1036 = vmatpush.msra.mxu0 0.0
    %1037 = vmatpush.msra.mxu0 0.0
    %1038 = vmatpush.msra.mxu0 0.0
    %1039 = vmatpush.msra.mxu0 0.0
    %1040 = vmatpush.msra.mxu0 0.0
    %1041 = vmatpush.msra.mxu0 0.0
    %1042 = vmatpush.msra.mxu0 0.0
    %1043 = vmatpush.msra.mxu0 0.0
    %1044 = vmatpush.msra.mxu0 0.0
    %1045 = vmatpush.msra.mxu0 0.0
    %1046 = vmatpush.msra.mxu0 0.0
    %1047 = vmatpush.msra.mxu0 0.0
    %1048 = vmatpush.msra.mxu0 0.0
    %v1049 = vand.u32 %v387, 4294901760
    %1050 = vmatpush.msra.mxu0 %v1049
    %v1051 = vand.u32 %v908, 4294901760
    %1052 = vmatmul.f32.gmra.mxu0 %v1051
    %v1053 = vpop.f32.mrf.mxu0
    %v1054 = vadd.f32 %v1032, %v1053
    %1055 = vdwg.mxu0
    %v1056 = vld [vmem:[%s1] sm:$0x1]
    %v1057 = vld [vmem:[%s2] sm:$0x1]
    %v1058 = vmul.f32 %v535, %v1054
    %v1060 = vperm.slane %v1056, 0
    %v1062 = vmul.f32 %v1058, %v1060
    %v1064 = vperm.slane %v1057, 0
    %v1066 = vadd.f32 %v1062, %v1064
    %1067 = vst [vmem:[#allocation2] sm:$0xf] %v1066
    // Predicated region
    $region22: #{tpu_custom_call.1} parent=1 // pred_check
      _
    $region23: #{tpu_custom_call.1} parent=1 // pred_check_branch
      %1069 = sbr.rel (0) target = $region25
    $region24: #{tpu_custom_call.1} parent=1 // pred_region
      %1071 = vsyncadd [#allocation3], 0
      %s1073 = sshll.u32 [#allocation2], 4
      %s1074 = int_to_ptr.vmem [resolvable:$true] %s1073
      %s1075 = sshll.u32 %s5, 4
      %s1076 = int_to_ptr.hbm [resolvable:$true] %s1075
      %1078 = dma.vmem_to_hbm [thread:$0]  %s1074, 64, %s1076, [#allocation3]
    $region25: #{tpu_custom_call.1} parent=1 // pred_fallthru
      _
    // Predicated region
    $region26: #{tpu_custom_call.1} parent=1 // pred_check
      _
    $region27: #{tpu_custom_call.1} parent=1 // pred_check_branch
      %1080 = sbr.rel (0) target = $region29
    $region28: #{tpu_custom_call.1} parent=1 // pred_region
      %1082 = dma.done [#allocation3], 64
    $region29: #{tpu_custom_call.1} parent=1 // pred_fallthru
      _
    %1083 = vsyncpa [#allocation3], 1

</llo_original>
